<compile_context>
chip_gen: v7x
topology: tpu7x:2x2x1
jax: 0.10.0
libtpu: 0.0.40
codegen_flags: <defaults>
</compile_context>

<pallas_src>
import jax
import jax.numpy as jnp
from jax.experimental import pallas as pl
from jax.experimental.pallas import tpu as pltpu

_MAX_TM = 512  # row-tile cap; ~85% of HBM roofline in measured tiled elementwise data


def _masked_sub_kernel(bmask_ref, z_ref, out_ref):
    # bmask_ref: (K,) int32 in SMEM  -- row indices of z to update
    # z_ref:     (TM, H*W) f32 in VMEM (current row tile)
    # out_ref:   (TM, H*W) f32 in VMEM (aliased with z's input buffer)
    tm = z_ref.shape[0]
    row0 = pl.program_id(0) * tm
    row_ids = row0 + jax.lax.broadcasted_iota(jnp.int32, (tm, 1), 0)  # global row ids

    # Per-row selection mask; OR over the (static, tiny) index list gives
    # write-once semantics even for duplicate indices.
    sel = row_ids == bmask_ref[0]
    for k in range(1, bmask_ref.shape[0]):
        sel = sel | (row_ids == bmask_ref[k])

    z = z_ref[...]
    out_ref[...] = jnp.where(sel, z - jnp.float32(0.1), z)


def _child_forward_impl(z: jax.Array, bmask: jax.Array) -> jax.Array:
    n, h, w = z.shape
    hw = h * w

    bmask = jnp.asarray(bmask, jnp.int32)
    # PyTorch allows negative indices in advanced indexing; normalize them so
    # they match the non-negative iota row ids inside the kernel.
    bmask = jnp.where(bmask < 0, bmask + n, bmask)

    z2d = z.reshape(n, hw)  # lane-oriented 2D slab for the kernel

    # Row-tile choice: full array for small N (block == full dims satisfies the
    # (8,128) rule), otherwise 512-row tiles with padding to a tile multiple.
    if n <= _MAX_TM:
        tm, n_pad = n, n
    else:
        tm = _MAX_TM
        n_pad = ((n + tm - 1) // tm) * tm
    if n_pad != n:
        # Padded rows have indices >= n, which never appear in bmask -> untouched.
        z2d = jnp.pad(z2d, ((0, n_pad - n), (0, 0)))

    out2d = pl.pallas_call(
        _masked_sub_kernel,
        out_shape=jax.ShapeDtypeStruct((n_pad, hw), z2d.dtype),
        grid=(n_pad // tm,),
        in_specs=[
            pl.BlockSpec(memory_space=pltpu.MemorySpace.SMEM),  # bmask indices
            pl.BlockSpec((tm, hw), lambda i: (i, 0)),           # z row tile
        ],
        out_specs=pl.BlockSpec((tm, hw), lambda i: (i, 0)),
        input_output_aliases={1: 0},  # update z in place (needs donation, see jit below)
        compiler_params=pltpu.CompilerParams(
            dimension_semantics=("parallel",),       # megacore-shardable on v7x
            vmem_limit_bytes=32 * 1024 * 1024,       # safe on v5e/v6e/v7x
        ),
    )(bmask, z2d)

    if n_pad != n:
        out2d = out2d[:n]
    return out2d.reshape(n, h, w)


# Donate z so the pallas input/output alias is backed by a real buffer
# donation -> genuine in-place update (no defensive copy of the z stream).
child_forward = jax.jit(_child_forward_impl, donate_argnums=(0,))


if __name__ == "__main__":
    key = jax.random.PRNGKey(0)
    # Deterministic stand-in for torch.rand(4, 2, 3) (parameter z in __init__).
    z = jax.random.uniform(key, (4, 2, 3), dtype=jnp.float32)

    bmask1 = jnp.array([3, 2], dtype=jnp.int32)                  # module-level bmask
    bmask2 = jnp.array([-1, 2, 2], dtype=jnp.int32)              # negative + duplicate

    # Pure-JAX references (PyTorch z[bmask] -= 0.1, write-once), computed BEFORE
    # the donated buffers are consumed.
    ref1 = z.at[bmask1].set(z[bmask1] - 0.1)
    norm2 = jnp.where(bmask2 < 0, bmask2 + z.shape[0], bmask2)
    ref2 = z.at[norm2].set(z[norm2] - 0.1)

    z_copy = z + 0.0  # separate buffer for the second (donated) call

    out1 = jax.block_until_ready(child_forward(z, bmask1))
    out2 = jax.block_until_ready(child_forward(z_copy, bmask2))

    assert jnp.allclose(out1, ref1, atol=1e-6), "mismatch vs reference (bmask=[3,2])"
    assert jnp.allclose(out2, ref2, atol=1e-6), "mismatch vs reference (neg/dup bmask)"

    print("KERNEL_OK")
</pallas_src>

<mosaic_0001>
module attributes {stable_mosaic.version = 11 : i64} {
  func.func @_masked_sub_kernel(%arg0: i32, %arg1: memref<2xi32, #tpu.memory_space<smem>>, %arg2: memref<4x6xf32, #tpu.memory_space<vmem>>, %arg3: memref<4x6xf32, #tpu.memory_space<vmem>>) attributes {dimension_semantics = [#tpu.dimension_semantics<parallel>], iteration_bounds = array<i64: 1>, scalar_prefetch = 0 : i64, scratch_operands = 0 : i64, tpu.core_type = #tpu.core_type<tc>, window_params = [{transform_indices = @transform_0, window_bounds = array<i64: 2>}, {transform_indices = @transform_1, window_bounds = array<i64: 4, 6>}, {transform_indices = @transform_2, window_bounds = array<i64: 4, 6>}]} {
    %c4_i32 = arith.constant 4 : i32
    %0 = arith.muli %arg0, %c4_i32 : i32
    %1 = tpu.iota {dimensions = array<i32: 0>} : vector<4x1xi32>
    %2 = vector.broadcast %0 : i32 to vector<4x1xi32>
    %3 = arith.addi %2, %1 : vector<4x1xi32>
    %c0 = arith.constant 0 : index
    %4 = memref.load %arg1[%c0] : memref<2xi32, #tpu.memory_space<smem>>
    %5 = vector.broadcast %4 : i32 to vector<4x1xi32>
    %6 = arith.cmpi eq, %3, %5 : vector<4x1xi32>
    %c1 = arith.constant 1 : index
    %7 = memref.load %arg1[%c1] : memref<2xi32, #tpu.memory_space<smem>>
    %8 = vector.broadcast %7 : i32 to vector<4x1xi32>
    %9 = arith.cmpi eq, %3, %8 : vector<4x1xi32>
    %10 = arith.ori %6, %9 : vector<4x1xi1>
    %c0_0 = arith.constant 0 : index
    %c0_1 = arith.constant 0 : index
    %11 = vector.load %arg2[%c0_0, %c0_1] : memref<4x6xf32, #tpu.memory_space<vmem>>, vector<4x6xf32>
    %cst = arith.constant 1.000000e-01 : f32
    %12 = vector.broadcast %cst : f32 to vector<4x6xf32>
    %13 = arith.subf %11, %12 : vector<4x6xf32>
    %14 = vector.shape_cast %10 : vector<4x1xi1> to vector<4x1xi1>
    %15 = vector.broadcast %14 : vector<4x1xi1> to vector<4x6xi1>
    %16 = arith.select %15, %13, %11 : vector<4x6xi1>, vector<4x6xf32>
    %c0_2 = arith.constant 0 : index
    %c0_3 = arith.constant 0 : index
    %17 = vector.load %arg3[%c0_2, %c0_3] : memref<4x6xf32, #tpu.memory_space<vmem>>, vector<4x6xf32>
    tpu.vector_store %arg3[%c0_2, %c0_3], %16 {strides = array<i32>} : memref<4x6xf32, #tpu.memory_space<vmem>>, vector<4x6xf32>,
    return
  }
  func.func @transform_0(%arg0: i32) -> i32 {
    %c0_i32 = arith.constant 0 : i32
    %c0_i32_0 = arith.constant 0 : i32
    return %c0_i32 : i32
  }
  func.func @transform_1(%arg0: i32) -> (i32, i32) {
    %c0_i32 = arith.constant 0 : i32
    %c0_i32_0 = arith.constant 0 : i32
    return %arg0, %c0_i32 : i32, i32
  }
  func.func @transform_2(%arg0: i32) -> (i32, i32) {
    %c0_i32 = arith.constant 0 : i32
    %c0_i32_0 = arith.constant 0 : i32
    return %arg0, %c0_i32 : i32, i32
  }
}

</mosaic_0001>

<llo_original>
// kernel: _child_forward_impl.1
$region0: #{_child_forward_impl.1}
  #allocation0 [shape = 'u32[]', space=smem, size = 0x4, offset = 0x4, fixed_abs, tag = 'smem constant byte address 0x4 - core index']
  #allocation1 [shape = 'u32[144,128]{1,0:T(1,128)}', space=vmem, size = 0x12000, scoped, tag = 'internal scratch']
  %s0 = inlined_call_operand.vmem [shape: s32[2], index: 0, kind: input, shape index: {}]
  %s1 = inlined_call_operand.vmem [shape: f32[4,6], index: 1, kind: input, shape index: {}, may-alias: {1,2}]
  %s2 = inlined_call_operand.vmem [shape: f32[4,6], index: 2, kind: output, shape index: {}, may-alias: {1,2}]
  %s3 = sld [smem:[#allocation0]]
  $region22: #{_child_forward_impl.1} parent=0
    _
  %s5 = ssub.s32 1, %s3
  %s6 = scalar_select 0, %s5, %s3
  $region1: #{_child_forward_impl.1} parent=0
    #allocation2 [shape = 'u8[512]{0}', space=smem, size = 0x200, scoped, tag = 'input window, operand 0, single buffered']
    #allocation3 [shape = 's32[1]{0}', space=sflag, size = 0x4, scoped, tag = 'scoped memory for _child_forward_impl.1']
    %7 = vsyncpa [#allocation3], 0
    // Predicated region
    $region2: #{_child_forward_impl.1} parent=1 // pred_check
      _
    $region3: #{_child_forward_impl.1} parent=1 // pred_check_branch
      %9 = sbr.rel (0) target = $region5
    $region4: #{_child_forward_impl.1} parent=1 // pred_region
      %s11 = ssub.s32 16, 16
      %12 = vsyncadd [#allocation3], %s11
      %s14 = sshll.u32 %s0, 4
      %s15 = int_to_ptr.vmem [resolvable:$true] %s14
      %17 = dma.vmem_to_smem %s15, 16, [#allocation2], [#allocation3]
    $region5: #{_child_forward_impl.1} parent=1 // pred_fallthru
      _
    // Predicated region
    $region6: #{_child_forward_impl.1} parent=1 // pred_check
      _
    $region7: #{_child_forward_impl.1} parent=1 // pred_check_branch
      %19 = sbr.rel (0) target = $region9
    $region8: #{_child_forward_impl.1} parent=1 // pred_region
      _
    $region9: #{_child_forward_impl.1} parent=1 // pred_fallthru
      _
    // Predicated region
    $region10: #{_child_forward_impl.1} parent=1 // pred_check
      _
    $region11: #{_child_forward_impl.1} parent=1 // pred_check_branch
      %21 = sbr.rel (0) target = $region13
    $region12: #{_child_forward_impl.1} parent=1 // pred_region
      %22 = dma.done [#allocation3], 16
    $region13: #{_child_forward_impl.1} parent=1 // pred_fallthru
      _
    %23 = sfence
    %s24 = smul.u32 0, 4
    %v25 = vlaneseq
    %v26 = vshrl.u32 %v25, 7
    %v27 = vstv %s24
    %v28 = vadd.s32 %v27, %v26
    %s29 = sld [smem:[#allocation2]]
    %v30 = vstv %s29
    %vm31 = vcmp.eq.s32.totalorder %v28, %v30
    %s32 = sld [smem:[#allocation2 + $0x1]]
    %v33 = vstv %s32
    %vm34 = vcmp.eq.s32.totalorder %v28, %v33
    %vm35 = vmor %vm31, %vm34
    %v36 = vld [vmem:[%s1] sm:$0xf]
    %v37 = vsub.f32 %v36, 0.1
    %v38 = vsel %vm35, 1, 0
    %vm39 = vcmp.eq.s32.totalorder %v38, 1
    %v40 = vsel %vm39, %v37, %v36
    %vm41 = vcmask 44032
    %42 = vst.msk [vmem:[%s2] sm:$0xf] %vm41, %v40
    // Predicated region
    $region14: #{_child_forward_impl.1} parent=1 // pred_check
      _
    $region15: #{_child_forward_impl.1} parent=1 // pred_check_branch
      %44 = sbr.rel (0) target = $region17
    $region16: #{_child_forward_impl.1} parent=1 // pred_region
      _
    $region17: #{_child_forward_impl.1} parent=1 // pred_fallthru
      _
    // Predicated region
    $region18: #{_child_forward_impl.1} parent=1 // pred_check
      _
    $region19: #{_child_forward_impl.1} parent=1 // pred_check_branch
      %46 = sbr.rel (0) target = $region21
    $region20: #{_child_forward_impl.1} parent=1 // pred_region
      _
    $region21: #{_child_forward_impl.1} parent=1 // pred_fallthru
      _
    %47 = vsyncpa [#allocation3], 1

</llo_original>
